<compile_context>
chip_gen: v5e
topology: v5e:2x2
jax: 0.10.0
libtpu: 0.0.40
codegen_flags: <defaults>
</compile_context>

<pallas_src>
import jax
import jax.numpy as jnp
from jax.experimental import pallas as pl
from jax.experimental.pallas import tpu as pltpu


def _alias_noop_kernel(x_ref, o_ref, flag_ref):
    # The output aliases the input, so its bytes are already correct and we
    # must not write it.  We only store one scalar to SMEM scratch so the
    # kernel body is non-empty and guaranteed to lower on every TPU
    # generation; no ordering hint (pltpu.touch) is needed because the call
    # has no other side effects to order against.
    del x_ref, o_ref
    flag_ref[0] = jnp.int32(1)


def generate_channel_dim(x):
    """Equivalent of torch `x.unsqueeze(1)` for a 4-D NCHW tensor."""
    B, C, H, W = x.shape
    itemsize = jnp.dtype(x.dtype).itemsize

    out = pl.pallas_call(
        _alias_noop_kernel,
        out_shape=jax.ShapeDtypeStruct((B, C, H, W), x.dtype),
        in_specs=[pl.BlockSpec(memory_space=pl.ANY)],
        out_specs=pl.BlockSpec(memory_space=pl.ANY),
        scratch_shapes=[pltpu.SMEM((1,), jnp.int32)],
        input_output_aliases={0: 0},
        compiler_params=pltpu.CompilerParams(has_side_effects=True),
        cost_estimate=pl.CostEstimate(
            flops=0,
            transcendentals=0,
            # Upper bound: one defensive copy if the input cannot be donated
            # (eager mode); zero when fused under jit with a temporary input.
            bytes_accessed=x.size * itemsize,
        ),
    )(x)

    # Free, metadata-only reshape to the unsqueezed 5-D shape.
    return out.reshape(B, 1, C, H, W)


if __name__ == "__main__":
    key = jax.random.PRNGKey(0)
    # Small NCHW input consistent with a conv-style module.
    x = jax.random.normal(key, (2, 4, 16, 16), dtype=jnp.float32)

    out = generate_channel_dim(x)
    out = jax.block_until_ready(out)

    # Reference: plain JAX unsqueeze at dim 1.
    ref = jnp.expand_dims(x, axis=1)

    assert out.shape == (2, 1, 4, 16, 16), out.shape
    assert out.dtype == x.dtype
    assert jnp.array_equal(out, ref)

    print("KERNEL_OK")
</pallas_src>

<mosaic_0001>
module attributes {stable_mosaic.version = 11 : i64} {
  func.func @_alias_noop_kernel(%arg0: memref<2x4x16x16xf32, #tpu.memory_space<any>>, %arg1: memref<2x4x16x16xf32, #tpu.memory_space<any>>, %arg2: memref<1xi32, #tpu.memory_space<smem>>) attributes {dimension_semantics = [], scalar_prefetch = 0 : i64, scratch_operands = 1 : i64, tpu.core_type = #tpu.core_type<tc>} {
    %c1_i32 = arith.constant 1 : i32
    %c0 = arith.constant 0 : index
    %0 = memref.load %arg2[%c0] : memref<1xi32, #tpu.memory_space<smem>>
    memref.store %c1_i32, %arg2[%c0] : memref<1xi32, #tpu.memory_space<smem>>
    return
  }
}

</mosaic_0001>

<llo_original>
// kernel: tpu_custom_call.1
$region0: #{tpu_custom_call.1}
  #allocation0 [shape = 'u32[]', space=smem, size = 0x4, offset = 0x4, fixed_abs, tag = 'smem constant byte address 0x4 - core index']
  #allocation1 [shape = 'u32[72,128]{1,0:T(1,128)}', space=vmem, size = 0x9000, scoped, tag = 'internal scratch']
  #allocation2 [shape = 's32[1]{0:T(128)}', space=smem, size = 0x200, scoped, tag = 'scratch operand']
  %s0 = inlined_call_operand.hbm [shape: f32[2,4,16,16], index: 0, kind: input, shape index: {}, may-alias: {0,1}]
  %s1 = inlined_call_operand.hbm [shape: f32[2,4,16,16], index: 1, kind: output, shape index: {}, may-alias: {0,1}]
  %s2 = sld [smem:[#allocation0]]
  $region2: #{tpu_custom_call.1} parent=0
    _
  %s4 = ssub.s32 1, %s2
  %s5 = scalar_select 0, %s4, %s2
  %s6 = scalar_lea.smem [#allocation2], 0
  %7 = sst [smem:[%s6]] 1

</llo_original>
